<compile_context>
chip_gen: v6e
topology: v6e:2x2x1
jax: 0.10.0
libtpu: 0.0.40
codegen_flags: <defaults>
</compile_context>

<pallas_src>
import functools

import jax
import jax.numpy as jnp
from jax.experimental import pallas as pl
from jax.experimental.pallas import tpu as pltpu


def _round_up(x, m):
    return ((x + m - 1) // m) * m


# ----------------------------------------------------------------------------
# Fused multi-layer GCN kernel.
#   grid = (n_layers, n_row_tiles)   (layer axis outermost, row tiles inner)
#   refs: adj row tile, padded X (resident), W_l, b_l  ->  out row tile
#   scratch: ping-pong activation buffer H, shape (2*N_pad, F_pad)
# ----------------------------------------------------------------------------
def _gcn_fused_kernel(adj_ref, x_ref, w_ref, b_ref, o_ref, h_ref,
                      *, n_layers, tm, n_pad, compute_dtype):
    l = pl.program_id(0)          # layer index        (dynamic)
    i = pl.program_id(1)          # node row-tile index (dynamic)

    # Prime the ping-pong activation buffer with the (padded) input features
    # once, at the very first grid step.  Scratch persists across grid steps.
    @pl.when((l == 0) & (i == 0))
    def _():
        h_ref[pl.ds(0, n_pad), :] = x_ref[...]

    # Previous layer's activations for ALL nodes, resident in VMEM scratch.
    # Layer l reads buffer (l % 2) and writes buffer ((l+1) % 2).
    rbuf_row = pl.multiple_of((l % 2) * n_pad, n_pad)
    h_prev = h_ref[pl.ds(rbuf_row, n_pad), :]

    # (Adj_tile @ H_prev) @ W_l : aggregate first so the full-graph transform
    # is never recomputed per row tile; f32 accumulation on the MXU.
    agg = jnp.dot(adj_ref[...].astype(compute_dtype),
                  h_prev.astype(compute_dtype),
                  preferred_element_type=jnp.float32)
    h_tile = jnp.dot(agg.astype(compute_dtype),
                     w_ref[0].astype(compute_dtype),
                     preferred_element_type=jnp.float32)
    h_tile = h_tile + b_ref[0]                       # (1, F_pad) row broadcast

    # ReLU on every layer except the last.  Branch-free scalar blend (scalar *
    # vector broadcasts are cheap and always supported by Mosaic).
    relu_gate = (l < (n_layers - 1)).astype(jnp.float32)
    h_tile = relu_gate * jnp.maximum(h_tile, 0.0) + (1.0 - relu_gate) * h_tile

    # Stash this row tile for the next layer in the other ping-pong half.
    wbuf_row = pl.multiple_of(((l + 1) % 2) * n_pad + i * tm, tm)
    h_ref[pl.ds(wbuf_row, tm), :] = h_tile

    # Write the tile to the output block; only the final layer's values
    # survive in HBM (the block is fully overwritten on every revisit).
    o_ref[...] = h_tile.astype(o_ref.dtype)


def gcn_forward(adj_norm, x, weights, biases, *, compute_dtype=jnp.float32):
    """Fused n-layer GCN forward on a dense, symmetrically-normalized adjacency.

    adj_norm: (N, N) float, already D^{-1/2} A D^{-1/2}
    x:        (N, in_dim) node features
    weights:  list of (f_in_l, f_out_l) matrices
    biases:   list of (f_out_l,) vectors
    """
    n = adj_norm.shape[0]
    in_dim = x.shape[1]
    n_layers = len(weights)
    out_dim = weights[-1].shape[1]

    # ---- lane-dense feature padding: every layer feature dim -> F_pad -------
    all_fdims = [in_dim] + [w.shape[1] for w in weights]
    f_pad = max(_round_up(d, 128) for d in all_fdims)

    # ---- row tiling (tm up to 128, sublane-aligned) --------------------------
    tm = 128 if n >= 128 else _round_up(n, 8)
    n_pad = _round_up(n, tm)
    n_tiles = n_pad // tm

    f32 = jnp.float32
    adj_p = jnp.zeros((n_pad, n_pad), f32).at[:n, :n].set(adj_norm.astype(f32))
    x_p = jnp.zeros((n_pad, f_pad), f32).at[:n, :in_dim].set(x.astype(f32))

    # Stacked, zero-padded parameters: padded-in rows and padded-out columns of
    # each W are zero, padded bias entries are zero, so padded feature columns
    # stay exactly zero through every layer.
    w_stack = jnp.zeros((n_layers, f_pad, f_pad), f32)
    b_stack = jnp.zeros((n_layers, 1, f_pad), f32)
    for li, (w, b) in enumerate(zip(weights, biases)):
        fi, fo = w.shape
        w_stack = w_stack.at[li, :fi, :fo].set(w.astype(f32))
        b_stack = b_stack.at[li, 0, :fo].set(b.astype(f32))

    kernel = functools.partial(
        _gcn_fused_kernel,
        n_layers=n_layers, tm=tm, n_pad=n_pad, compute_dtype=compute_dtype)

    out_p = pl.pallas_call(
        kernel,
        out_shape=jax.ShapeDtypeStruct((n_pad, f_pad), jnp.float32),
        grid=(n_layers, n_tiles),
        in_specs=[
            # adjacency row tile: rows of the current tile, all columns
            pl.BlockSpec((tm, n_pad), lambda l, i: (i, 0)),
            # padded input features: constant block -> DMA'd once, resident
            pl.BlockSpec((n_pad, f_pad), lambda l, i: (0, 0)),
            # per-layer weight / bias, selected by the layer grid axis
            pl.BlockSpec((1, f_pad, f_pad), lambda l, i: (l, 0, 0)),
            pl.BlockSpec((1, 1, f_pad), lambda l, i: (l, 0, 0)),
        ],
        out_specs=pl.BlockSpec((tm, f_pad), lambda l, i: (i, 0)),
        scratch_shapes=[pltpu.VMEM((2 * n_pad, f_pad), jnp.float32)],
        compiler_params=pltpu.CompilerParams(
            # layer axis is a sequential dependency; row tiles feed the next
            # layer through scratch, so both axes must be "arbitrary".
            dimension_semantics=("arbitrary", "arbitrary"),
            vmem_limit_bytes=32 * 1024 * 1024,
        ),
    )(adj_p, x_p, w_stack, b_stack)

    return out_p[:n, :out_dim]


# Plain-JAX reference (same aggregate-first association as the kernel; the two
# associations are mathematically identical, and DGL itself picks either).
def gcn_forward_ref(adj_norm, x, weights, biases):
    h = x
    n_layers = len(weights)
    for li in range(n_layers):
        h = (adj_norm @ h) @ weights[li] + biases[li][None, :]
        if li < n_layers - 1:
            h = jnp.maximum(h, 0.0)
    return h


if __name__ == "__main__":
    key = jax.random.PRNGKey(0)
    N, in_dim, hid_dim, out_dim, n_layers = 16, 8, 32, 4, 3

    k_adj, k_x, *w_keys = jax.random.split(key, 2 + n_layers)

    # ---- small undirected graph with self-loops (dense adjacency) ----------
    a = (jax.random.uniform(k_adj, (N, N)) < 0.3).astype(jnp.float32)
    adj = jnp.maximum(a, a.T)
    adj = jnp.maximum(adj, jnp.eye(N, dtype=jnp.float32))
    deg = adj.sum(axis=1)
    d_inv_sqrt = 1.0 / jnp.sqrt(deg)
    adj_norm = adj * d_inv_sqrt[:, None] * d_inv_sqrt[None, :]   # norm='both'

    # ---- node features ------------------------------------------------------
    x = jax.random.normal(k_x, (N, in_dim), dtype=jnp.float32)

    # ---- deterministic params (xavier-uniform weights, zero bias) -----------
    layer_dims = [in_dim] + [hid_dim] * (n_layers - 1) + [out_dim]
    weights, biases = [], []
    for li in range(n_layers):
        f_in, f_out = layer_dims[li], layer_dims[li + 1]
        bound = jnp.sqrt(6.0 / (f_in + f_out))
        w = jax.random.uniform(w_keys[li], (f_in, f_out), jnp.float32,
                               minval=-bound, maxval=bound)
        weights.append(w)
        biases.append(jnp.zeros((f_out,), jnp.float32))

    # ---- run the fused Pallas GCN -------------------------------------------
    out = gcn_forward(adj_norm, x, weights, biases)
    out = jax.block_until_ready(out)

    # ---- sanity check vs plain-JAX reference --------------------------------
    ref = gcn_forward_ref(adj_norm, x, weights, biases)
    assert out.shape == (N, out_dim)
    assert jnp.allclose(out, ref, atol=1e-4, rtol=1e-4), "mismatch vs reference"

    print("KERNEL_OK")
</pallas_src>

<mosaic_0001>
module attributes {stable_mosaic.version = 11 : i64} {
  func.func @_gcn_fused_kernel(%arg0: i32, %arg1: i32, %arg2: memref<16x16xf32, #tpu.memory_space<vmem>>, %arg3: memref<16x128xf32, #tpu.memory_space<vmem>>, %arg4: memref<1x128x128xf32, #tpu.memory_space<vmem>>, %arg5: memref<1x1x128xf32, #tpu.memory_space<vmem>>, %arg6: memref<16x128xf32, #tpu.memory_space<vmem>>, %arg7: memref<32x128xf32, #tpu.memory_space<vmem>>) attributes {dimension_semantics = [#tpu.dimension_semantics<arbitrary>, #tpu.dimension_semantics<arbitrary>], iteration_bounds = array<i64: 3, 1>, scalar_prefetch = 0 : i64, scratch_operands = 1 : i64, tpu.core_type = #tpu.core_type<tc>, window_params = [{transform_indices = @transform_0, window_bounds = array<i64: 16, 16>}, {pipeline_mode = #tpu.pipeline_mode<synchronous>, transform_indices = @transform_1, window_bounds = array<i64: 16, 128>}, {transform_indices = @transform_2, window_bounds = array<i64: 1, 128, 128>}, {transform_indices = @transform_3, window_bounds = array<i64: 1, 1, 128>}, {transform_indices = @transform_4, window_bounds = array<i64: 16, 128>}]} {
    %c0_i32 = arith.constant 0 : i32
    %0 = arith.cmpi eq, %arg0, %c0_i32 : i32
    %c0_i32_0 = arith.constant 0 : i32
    %1 = arith.cmpi eq, %arg1, %c0_i32_0 : i32
    %2 = arith.andi %0, %1 : i1
    %3 = arith.extui %2 : i1 to i32
    %c0_i32_1 = arith.constant 0 : i32
    %4 = arith.cmpi ne, %3, %c0_i32_1 : i32
    scf.if %4 {
      %c0_30 = arith.constant 0 : index
      %c0_31 = arith.constant 0 : index
      %57 = vector.load %arg3[%c0_30, %c0_31] : memref<16x128xf32, #tpu.memory_space<vmem>>, vector<16x128xf32>
      %c0_32 = arith.constant 0 : index
      %c0_33 = arith.constant 0 : index
      %58 = vector.load %arg7[%c0_32, %c0_33] : memref<32x128xf32, #tpu.memory_space<vmem>>, vector<16x128xf32>
      tpu.vector_store %arg7[%c0_32, %c0_33], %57 {strides = array<i32>} : memref<32x128xf32, #tpu.memory_space<vmem>>, vector<16x128xf32>,
    } else {
    }
    %c2_i32 = arith.constant 2 : i32
    %c0_i32_2 = arith.constant 0 : i32
    %5 = arith.cmpi eq, %c2_i32, %c0_i32_2 : i32
    %c1_i32 = arith.constant 1 : i32
    %6 = arith.select %5, %c1_i32, %c2_i32 : i32
    %7 = arith.remsi %arg0, %6 : i32
    %c0_i32_3 = arith.constant 0 : i32
    %8 = arith.cmpi ne, %7, %c0_i32_3 : i32
    %c0_i32_4 = arith.constant 0 : i32
    %9 = arith.cmpi slt, %7, %c0_i32_4 : i32
    %c0_i32_5 = arith.constant 0 : i32
    %10 = arith.cmpi slt, %6, %c0_i32_5 : i32
    %11 = arith.xori %9, %10 : i1
    %12 = arith.andi %11, %8 : i1
    %13 = arith.addi %7, %6 : i32
    %14 = arith.select %12, %13, %7 : i32
    %c16_i32 = arith.constant 16 : i32
    %15 = arith.muli %14, %c16_i32 : i32
    %16 = tpu.assume_multiple %15, 16 : i32
    %17 = arith.index_cast %16 : i32 to index
    %c0 = arith.constant 0 : index
    %18 = vector.load %arg7[%17, %c0] : memref<32x128xf32, #tpu.memory_space<vmem>>, vector<16x128xf32>
    %c0_6 = arith.constant 0 : index
    %c0_7 = arith.constant 0 : index
    %19 = vector.load %arg2[%c0_6, %c0_7] : memref<16x16xf32, #tpu.memory_space<vmem>>, vector<16x16xf32>
    %cst = arith.constant dense<0.000000e+00> : vector<16x128xf32>
    %20 = tpu.matmul %19, %18, %cst {dimension_numbers = #tpu.dot_dimension_numbers<[1], [0], [0], [1], [0, 0, 1, 1], [], []>} : vector<16x16xf32>, vector<16x128xf32>, vector<16x128xf32> -> vector<16x128xf32>
    %c0_8 = arith.constant 0 : index
    %c0_9 = arith.constant 0 : index
    %c0_10 = arith.constant 0 : index
    %21 = vector.load %arg4[%c0_8, %c0_9, %c0_10] : memref<1x128x128xf32, #tpu.memory_space<vmem>>, vector<1x128x128xf32>
    %22 = vector.shape_cast %21 : vector<1x128x128xf32> to vector<128x128xf32>
    %cst_11 = arith.constant dense<0.000000e+00> : vector<16x128xf32>
    %23 = tpu.matmul %20, %22, %cst_11 {dimension_numbers = #tpu.dot_dimension_numbers<[1], [0], [0], [1], [0, 0, 1, 1], [], []>} : vector<16x128xf32>, vector<128x128xf32>, vector<16x128xf32> -> vector<16x128xf32>
    %c0_12 = arith.constant 0 : index
    %c0_13 = arith.constant 0 : index
    %c0_14 = arith.constant 0 : index
    %24 = vector.load %arg5[%c0_12, %c0_13, %c0_14] : memref<1x1x128xf32, #tpu.memory_space<vmem>>, vector<1x1x128xf32>
    %25 = vector.shape_cast %24 : vector<1x1x128xf32> to vector<1x128xf32>
    %26 = vector.broadcast %25 : vector<1x128xf32> to vector<16x128xf32>
    %27 = arith.addf %23, %26 : vector<16x128xf32>
    %c2_i32_15 = arith.constant 2 : i32
    %28 = arith.cmpi slt, %arg0, %c2_i32_15 : i32
    %29 = arith.extui %28 : i1 to i32
    %30 = arith.sitofp %29 : i32 to f32
    %cst_16 = arith.constant 0.000000e+00 : f32
    %31 = vector.broadcast %cst_16 : f32 to vector<16x128xf32>
    %32 = arith.maximumf %27, %31 : vector<16x128xf32>
    %33 = vector.broadcast %30 : f32 to vector<16x128xf32>
    %34 = arith.mulf %33, %32 : vector<16x128xf32>
    %cst_17 = arith.constant 1.000000e+00 : f32
    %35 = arith.subf %cst_17, %30 : f32
    %36 = vector.broadcast %35 : f32 to vector<16x128xf32>
    %37 = arith.mulf %36, %27 : vector<16x128xf32>
    %38 = arith.addf %34, %37 : vector<16x128xf32>
    %c1_i32_18 = arith.constant 1 : i32
    %39 = arith.addi %arg0, %c1_i32_18 : i32
    %c2_i32_19 = arith.constant 2 : i32
    %c0_i32_20 = arith.constant 0 : i32
    %40 = arith.cmpi eq, %c2_i32_19, %c0_i32_20 : i32
    %c1_i32_21 = arith.constant 1 : i32
    %41 = arith.select %40, %c1_i32_21, %c2_i32_19 : i32
    %42 = arith.remsi %39, %41 : i32
    %c0_i32_22 = arith.constant 0 : i32
    %43 = arith.cmpi ne, %42, %c0_i32_22 : i32
    %c0_i32_23 = arith.constant 0 : i32
    %44 = arith.cmpi slt, %42, %c0_i32_23 : i32
    %c0_i32_24 = arith.constant 0 : i32
    %45 = arith.cmpi slt, %41, %c0_i32_24 : i32
    %46 = arith.xori %44, %45 : i1
    %47 = arith.andi %46, %43 : i1
    %48 = arith.addi %42, %41 : i32
    %49 = arith.select %47, %48, %42 : i32
    %c16_i32_25 = arith.constant 16 : i32
    %50 = arith.muli %49, %c16_i32_25 : i32
    %c16_i32_26 = arith.constant 16 : i32
    %51 = arith.muli %arg1, %c16_i32_26 : i32
    %52 = arith.addi %50, %51 : i32
    %53 = tpu.assume_multiple %52, 16 : i32
    %54 = arith.index_cast %53 : i32 to index
    %c0_27 = arith.constant 0 : index
    %55 = vector.load %arg7[%54, %c0_27] : memref<32x128xf32, #tpu.memory_space<vmem>>, vector<16x128xf32>
    tpu.vector_store %arg7[%54, %c0_27], %38 {strides = array<i32>} : memref<32x128xf32, #tpu.memory_space<vmem>>, vector<16x128xf32>,
    %c0_28 = arith.constant 0 : index
    %c0_29 = arith.constant 0 : index
    %56 = vector.load %arg6[%c0_28, %c0_29] : memref<16x128xf32, #tpu.memory_space<vmem>>, vector<16x128xf32>
    tpu.vector_store %arg6[%c0_28, %c0_29], %38 {strides = array<i32>} : memref<16x128xf32, #tpu.memory_space<vmem>>, vector<16x128xf32>,
    return
  }
  func.func @transform_0(%arg0: i32, %arg1: i32) -> (i32, i32) {
    %c0_i32 = arith.constant 0 : i32
    %c0_i32_0 = arith.constant 0 : i32
    return %arg1, %c0_i32 : i32, i32
  }
  func.func @transform_1(%arg0: i32, %arg1: i32) -> (i32, i32) {
    %c0_i32 = arith.constant 0 : i32
    %c0_i32_0 = arith.constant 0 : i32
    %c0_i32_1 = arith.constant 0 : i32
    return %c0_i32, %c0_i32_0 : i32, i32
  }
  func.func @transform_2(%arg0: i32, %arg1: i32) -> (i32, i32, i32) {
    %c0_i32 = arith.constant 0 : i32
    %c0_i32_0 = arith.constant 0 : i32
    %c0_i32_1 = arith.constant 0 : i32
    return %arg0, %c0_i32, %c0_i32_0 : i32, i32, i32
  }
  func.func @transform_3(%arg0: i32, %arg1: i32) -> (i32, i32, i32) {
    %c0_i32 = arith.constant 0 : i32
    %c0_i32_0 = arith.constant 0 : i32
    %c0_i32_1 = arith.constant 0 : i32
    return %arg0, %c0_i32, %c0_i32_0 : i32, i32, i32
  }
  func.func @transform_4(%arg0: i32, %arg1: i32) -> (i32, i32) {
    %c0_i32 = arith.constant 0 : i32
    %c0_i32_0 = arith.constant 0 : i32
    return %arg1, %c0_i32 : i32, i32
  }
}

</mosaic_0001>

<llo_original>
// kernel: tpu_custom_call.1
$region0: #{tpu_custom_call.1}
  #allocation0 [shape = 'u32[]', space=smem, size = 0x4, offset = 0x4, fixed_abs, tag = 'smem constant byte address 0x4 - core index']
  #allocation1 [shape = 'u32[144,128]{1,0:T(1,128)}', space=vmem, size = 0x12000, scoped, tag = 'internal scratch']
  #allocation2 [shape = 'f32[32,128]{1,0:T(8,128)}', space=vmem, size = 0x4000, scoped, tag = 'scratch operand']
  %s0 = inlined_call_operand.hbm [shape: f32[16,16], index: 0, kind: input, shape index: {}]
  %s1 = inlined_call_operand.hbm [shape: f32[16,128], index: 1, kind: input, shape index: {}]
  %s2 = inlined_call_operand.hbm [shape: f32[3,128,128], index: 2, kind: input, shape index: {}]
  %s3 = inlined_call_operand.vmem [shape: f32[3,1,128], index: 3, kind: input, shape index: {}]
  %s4 = inlined_call_operand.hbm [shape: f32[16,128], index: 4, kind: output, shape index: {}]
  %s5 = sld [smem:[#allocation0]]
  $region65: #{tpu_custom_call.1} parent=0
    _
  %s7 = ssub.s32 1, %s5
  %s8 = scalar_select 0, %s7, %s5
  $region1: #{tpu_custom_call.1} parent=0
    #allocation3 [shape = 'u8[8192]{0}', space=vmem, size = 0x2000, scoped, tag = 'input window, operand 0, single buffered']
    #allocation4 [shape = 's32[2]{0}', space=sflag, size = 0x8, scoped, tag = 'scoped memory for tpu_custom_call.1']
    #allocation5 [shape = 's32[2]{0}', space=sflag, size = 0x8, scoped, tag = 'scoped memory for tpu_custom_call.1']
    #allocation6 [shape = 'u8[8192]{0}', space=vmem, size = 0x2000, scoped, tag = 'input window, operand 1, single buffered']
    #allocation7 [shape = 's32[1]{0}', space=sflag, size = 0x4, scoped, tag = 'scoped memory for tpu_custom_call.1']
    #allocation8 [shape = 'u8[131072]{0}', space=vmem, size = 0x20000, scoped, tag = 'input window, operand 2']
    #allocation9 [shape = 'u8[8192]{0}', space=vmem, size = 0x2000, scoped, tag = 'output window, operand 0, single buffered']
    %9 = vsyncpa [#allocation4], 0
    %10 = vsyncpa [#allocation7], 0
    %11 = vsyncpa [#allocation5], 0
    loop: start=0, step=1, limit=5
    $region2: #{tpu_custom_call.1} parent=1 // loop_pre_header
      _
    $region3: #{tpu_custom_call.1} parent=1 // loop_header
      %s13 = sphi 0, %s17
      %p14 = scmp.ge.s32.totalorder %s13, 5
      %s20 = sphi 0, %s32
      %s21 = sphi 0, %s28
      %s22 = sphi 0, %s20
      %s23 = sphi 0, %s21
      %s24 = sphi 0, %s22
      %s25 = sphi 0, %s23
      %s35 = sphi 0, %s37
      %s38 = sphi 0, %s35
      %s39 = sphi 0, %s38
      %s55 = sphi 0, %s39
      %s59 = sphi 0, %s59
      %s61 = sphi 0, %s59
      %s62 = sphi 0, %s61
      %s76 = sphi 0, %s62
      %s82 = sphi 0, %s84
      %s85 = sphi 0, %s82
      %s86 = sphi 0, %s85
      %s102 = sphi 0, %s86
      %s108 = sphi 0, %s110
      %s111 = sphi 0, %s108
      %s112 = sphi 0, %s111
      %s128 = sphi 0, %s112
      %s134 = sphi 0, %s136
      %s137 = sphi 0, %s134
      %s138 = sphi 0, %s137
      %s154 = sphi 0, %s138
    $region4: #{tpu_custom_call.1} parent=1 // loop_header_branch
      %16 = sbr.rel (%p14) target = $region8
    $region5: #{tpu_custom_call.1} parent=1 // loop_body
      %s18 = ssub.s32 %s13, 1
      %s19 = ssub.s32 %s13, 2
      %s26 = sadd.s32 1, %s21
      %p27 = scmp.ge.s32.totalorder %s26, 1
      %s28 = scalar_select %p27, 0, %s26
      %s29 = sadd.s32 1, %s20
      %s30 = scalar_select %p27, %s29, %s20
      %p31 = scmp.ge.s32.totalorder %s30, 3
      %s32 = scalar_select %p31, 0, %s30
      %s33 = ssub.s32 %s21, %s28
      %p34 = scmp.eq.s32.totalorder %s33, 0
      %s36 = sadd.s32 %s35, 1
      %s37 = scalar_select %p34, %s35, %s36
      %p40 = pneg %p34
      %p41 = scmp.eq.s32.totalorder %s13, 2
      %p42 = por %p40, %p41
      %p43 = scmp.ne.s32.totalorder %s35, %s38
      %p44 = scmp.eq.s32.totalorder %s13, 0
      %p45 = por %p43, %p44
      %p46 = scmp.ne.s32.totalorder %s35, %s38
      %p47 = scmp.eq.s32.totalorder %s18, 2
      %p48 = por %p46, %p47
      %p49 = scmp.ne.s32.totalorder %s38, %s39
      %p50 = scmp.eq.s32.totalorder %s18, 0
      %p51 = por %p49, %p50
      %p52 = scmp.ne.s32.totalorder %s38, %s39
      %p53 = scmp.eq.s32.totalorder %s19, 2
      %p54 = por %p52, %p53
      %p56 = scmp.ne.s32.totalorder %s39, %s55
      %p57 = scmp.eq.s32.totalorder %s19, 0
      %p58 = por %p56, %p57
      %s60 = sadd.s32 %s59, 1
      %p63 = scmp.eq.s32.totalorder %s13, 2
      %p64 = scmp.ne.s32.totalorder %s59, %s61
      %p65 = scmp.eq.s32.totalorder %s13, 0
      %p66 = por %p64, %p65
      %p67 = scmp.ne.s32.totalorder %s59, %s61
      %p68 = scmp.eq.s32.totalorder %s18, 2
      %p69 = por %p67, %p68
      %p70 = scmp.ne.s32.totalorder %s61, %s62
      %p71 = scmp.eq.s32.totalorder %s18, 0
      %p72 = por %p70, %p71
      %p73 = scmp.ne.s32.totalorder %s61, %s62
      %p74 = scmp.eq.s32.totalorder %s19, 2
      %p75 = por %p73, %p74
      %p77 = scmp.ne.s32.totalorder %s62, %s76
      %p78 = scmp.eq.s32.totalorder %s19, 0
      %p79 = por %p77, %p78
      %s80 = ssub.s32 %s20, %s32
      %p81 = scmp.eq.s32.totalorder %s80, 0
      %s83 = sadd.s32 %s82, 1
      %s84 = scalar_select %p81, %s82, %s83
      %p87 = pneg %p81
      %p88 = scmp.eq.s32.totalorder %s13, 2
      %p89 = por %p87, %p88
      %p90 = scmp.ne.s32.totalorder %s82, %s85
      %p91 = scmp.eq.s32.totalorder %s13, 0
      %p92 = por %p90, %p91
      %p93 = scmp.ne.s32.totalorder %s82, %s85
      %p94 = scmp.eq.s32.totalorder %s18, 2
      %p95 = por %p93, %p94
      %p96 = scmp.ne.s32.totalorder %s85, %s86
      %p97 = scmp.eq.s32.totalorder %s18, 0
      %p98 = por %p96, %p97
      %p99 = scmp.ne.s32.totalorder %s85, %s86
      %p100 = scmp.eq.s32.totalorder %s19, 2
      %p101 = por %p99, %p100
      %p103 = scmp.ne.s32.totalorder %s86, %s102
      %p104 = scmp.eq.s32.totalorder %s19, 0
      %p105 = por %p103, %p104
      %s106 = ssub.s32 %s20, %s32
      %p107 = scmp.eq.s32.totalorder %s106, 0
      %s109 = sadd.s32 %s108, 1
      %s110 = scalar_select %p107, %s108, %s109
      %p113 = pneg %p107
      %p114 = scmp.eq.s32.totalorder %s13, 2
      %p115 = por %p113, %p114
      %p116 = scmp.ne.s32.totalorder %s108, %s111
      %p117 = scmp.eq.s32.totalorder %s13, 0
      %p118 = por %p116, %p117
      %p119 = scmp.ne.s32.totalorder %s108, %s111
      %p120 = scmp.eq.s32.totalorder %s18, 2
      %p121 = por %p119, %p120
      %p122 = scmp.ne.s32.totalorder %s111, %s112
      %p123 = scmp.eq.s32.totalorder %s18, 0
      %p124 = por %p122, %p123
      %p125 = scmp.ne.s32.totalorder %s111, %s112
      %p126 = scmp.eq.s32.totalorder %s19, 2
      %p127 = por %p125, %p126
      %p129 = scmp.ne.s32.totalorder %s112, %s128
      %p130 = scmp.eq.s32.totalorder %s19, 0
      %p131 = por %p129, %p130
      %s132 = ssub.s32 %s21, %s28
      %p133 = scmp.eq.s32.totalorder %s132, 0
      %s135 = sadd.s32 %s134, 1
      %s136 = scalar_select %p133, %s134, %s135
      %p139 = pneg %p133
      %p140 = scmp.eq.s32.totalorder %s13, 2
      %p141 = por %p139, %p140
      %p142 = scmp.ne.s32.totalorder %s134, %s137
      %p143 = scmp.eq.s32.totalorder %s13, 0
      %p144 = por %p142, %p143
      %p145 = scmp.ne.s32.totalorder %s134, %s137
      %p146 = scmp.eq.s32.totalorder %s18, 2
      %p147 = por %p145, %p146
      %p148 = scmp.ne.s32.totalorder %s137, %s138
      %p149 = scmp.eq.s32.totalorder %s18, 0
      %p150 = por %p148, %p149
      %p151 = scmp.ne.s32.totalorder %s137, %s138
      %p152 = scmp.eq.s32.totalorder %s19, 2
      %p153 = por %p151, %p152
      %p155 = scmp.ne.s32.totalorder %s138, %s154
      %p156 = scmp.eq.s32.totalorder %s19, 0
      %p157 = por %p155, %p156
      %p158 = scmp.le.s32.totalorder 1, %s13
      %p159 = scmp.lt.s32.totalorder %s13, 4
      %p160 = pnand %p158, %p159
      %p161 = pneg %p160
      // Predicated region
      $region9: #{tpu_custom_call.1} parent=5 // pred_check
        _
      $region10: #{tpu_custom_call.1} parent=5 // pred_check_branch
        %163 = sbr.rel (%p160) target = $region12
      $region11: #{tpu_custom_call.1} parent=5 // pred_region
        %s164 = ssub.s32 %s13, 1
        // Predicated region
        $region13: #{tpu_custom_call.1} parent=11 // pred_check
          %p165 = pneg %p51
        $region14: #{tpu_custom_call.1} parent=11 // pred_check_branch
          %167 = sbr.rel (%p165) target = $region16
        $region15: #{tpu_custom_call.1} parent=11 // pred_region
          %s168 = smul.u32 2, %s23
          %s170 = ssub.s32 256, 256
          %171 = vsyncadd [#allocation4], %s170
          %s172 = smul.addr %s168, 128
          %s173 = scalar_lea.hbm %s0, %s172
          %s174 = sshll.u32 [#allocation3], 4
          %s175 = int_to_ptr.vmem [resolvable:$true] %s174
          %180 = dma.hbm_to_vmem [thread:$0]  %s173, 256, %s175, [#allocation4], 128, 128, 8
        $region16: #{tpu_custom_call.1} parent=11 // pred_fallthru
          _
        // Predicated region
        $region17: #{tpu_custom_call.1} parent=11 // pred_check
          %p181 = pneg %p72
        $region18: #{tpu_custom_call.1} parent=11 // pred_check_branch
          %183 = sbr.rel (%p181) target = $region20
        $region19: #{tpu_custom_call.1} parent=11 // pred_region
          %s185 = ssub.s32 256, 256
          %186 = vsyncadd [#allocation7], %s185
          %s187 = sshll.u32 [#allocation6], 4
          %s188 = int_to_ptr.vmem [resolvable:$true] %s187
          %193 = dma.hbm_to_vmem [thread:$0]  %s1, 256, %s188, [#allocation7], 128, 128, 8
        $region20: #{tpu_custom_call.1} parent=11 // pred_fallthru
          _
      $region12: #{tpu_custom_call.1} parent=5 // pred_fallthru
        _
      %p194 = scmp.lt.s32.totalorder %s13, 3
      // Predicated region
      $region21: #{tpu_custom_call.1} parent=5 // pred_check
        %p195 = pneg %p194
      $region22: #{tpu_custom_call.1} parent=5 // pred_check_branch
        %197 = sbr.rel (%p195) target = $region24
      $region23: #{tpu_custom_call.1} parent=5 // pred_region
        // Predicated region
        $region25: #{tpu_custom_call.1} parent=23 // pred_check
          %p198 = pneg %p92
        $region26: #{tpu_custom_call.1} parent=23 // pred_check_branch
          %200 = sbr.rel (%p198) target = $region28
        $region27: #{tpu_custom_call.1} parent=23 // pred_region
          %s201 = sand.u32 %s13, 1
          %s202 = scalar_lea.sflag [#allocation4], %s201
          %s203 = sand.u32 %s82, 1
          %s204 = smul.addr %s203, 128
          %s205 = scalar_lea.vmem [#allocation8], %s204
          %s207 = ssub.s32 2048, 2048
          %208 = vsyncadd %s202, %s207
          %s209 = smul.addr %s20, 16
          %s210 = smul.addr %s209, 128
          %s211 = scalar_lea.hbm %s2, %s210
          %s212 = sshll.u32 %s205, 4
          %s213 = int_to_ptr.vmem [resolvable:$true] %s212
          %218 = dma.hbm_to_vmem [thread:$0]  %s211, 2048, %s213, %s202, 128, 128, 8
        $region28: #{tpu_custom_call.1} parent=23 // pred_fallthru
          _
        // Predicated region
        $region29: #{tpu_custom_call.1} parent=23 // pred_check
          %p219 = pneg %p118
        $region30: #{tpu_custom_call.1} parent=23 // pred_check_branch
          %221 = sbr.rel (%p219) target = $region32
        $region31: #{tpu_custom_call.1} parent=23 // pred_region
          %p222 = scmp.lt.s32.totalorder %s20, 2
          %s223 = scalar_select %p222, %s20, 2
          %s224 = scalar_lea.vmem %s3, %s223
        $region32: #{tpu_custom_call.1} parent=23 // pred_fallthru
          _
      $region24: #{tpu_custom_call.1} parent=5 // pred_fallthru
        _
      %p225 = scmp.le.s32.totalorder 1, %s13
      %p226 = scmp.lt.s32.totalorder %s13, 4
      %p227 = pnand %p225, %p226
      %p228 = pneg %p227
      // Predicated region
      $region33: #{tpu_custom_call.1} parent=5 // pred_check
        _
      $region34: #{tpu_custom_call.1} parent=5 // pred_check_branch
        %230 = sbr.rel (%p227) target = $region36
      $region35: #{tpu_custom_call.1} parent=5 // pred_region
        %s231 = ssub.s32 %s13, 1
        // Predicated region
        $region37: #{tpu_custom_call.1} parent=35 // pred_check
          %p232 = pneg %p51
        $region38: #{tpu_custom_call.1} parent=35 // pred_check_branch
          %234 = sbr.rel (%p232) target = $region40
        $region39: #{tpu_custom_call.1} parent=35 // pred_region
          %235 = dma.done [#allocation4], 256
        $region40: #{tpu_custom_call.1} parent=35 // pred_fallthru
          _
        // Predicated region
        $region41: #{tpu_custom_call.1} parent=35 // pred_check
          %p236 = pneg %p72
        $region42: #{tpu_custom_call.1} parent=35 // pred_check_branch
          %238 = sbr.rel (%p236) target = $region44
        $region43: #{tpu_custom_call.1} parent=35 // pred_region
          %239 = dma.done [#allocation7], 256
        $region44: #{tpu_custom_call.1} parent=35 // pred_fallthru
          _
        %s240 = sand.u32 %s18, 1
        %s241 = scalar_lea.sflag [#allocation4], %s240
        %s242 = sand.u32 %s85, 1
        %s243 = smul.addr %s242, 128
        %s244 = scalar_lea.vmem [#allocation8], %s243
        // Predicated region
        $region45: #{tpu_custom_call.1} parent=35 // pred_check
          %p245 = pneg %p98
        $region46: #{tpu_custom_call.1} parent=35 // pred_check_branch
          %247 = sbr.rel (%p245) target = $region48
        $region47: #{tpu_custom_call.1} parent=35 // pred_region
          %248 = dma.done %s241, 2048
        $region48: #{tpu_custom_call.1} parent=35 // pred_fallthru
          _
        %p249 = pneg %p51
        %p250 = pneg %p48
        %p251 = pneg %p72
        %p252 = pneg %p69
        %s253 = sand.u32 %s18, 1
        %s254 = scalar_lea.sflag [#allocation4], %s253
        %s255 = sand.u32 %s85, 1
        %s256 = smul.addr %s255, 128
        %s257 = scalar_lea.vmem [#allocation8], %s256
        %p258 = pneg %p98
        %p259 = pneg %p95
        %p260 = scmp.lt.s32.totalorder %s22, 2
        %s261 = scalar_select %p260, %s22, 2
        %s262 = scalar_lea.vmem %s3, %s261
        %p263 = pneg %p124
        %p264 = pneg %p121
        %p265 = pneg %p150
        %p266 = pneg %p147
        %s267 = smul.u32 2, %s23
        %p268 = scmp.lt.s32.totalorder %s22, 2
        %s269 = scalar_select %p268, %s22, 2
        %s270 = scalar_lea.vmem %s3, %s269
        %s271 = smul.u32 2, %s23
        %p272 = scmp.eq.s32.totalorder %s22, 0
        %p273 = scmp.eq.s32.totalorder %s23, 0
        %p274 = pnand %p272, %p273
        %p275 = pneg %p274
        // Predicated region
        $region49: #{tpu_custom_call.1} parent=35 // pred_check
          _
        $region50: #{tpu_custom_call.1} parent=35 // pred_check_branch
          %277 = sbr.rel (%p274) target = $region52
        $region51: #{tpu_custom_call.1} parent=35 // pred_region
          %v278 = vld [vmem:[#allocation6] sm:$0xff]
          %v279 = vld [vmem:[#allocation6 + $0x8] sm:$0xff]
          %280 = vst [vmem:[#allocation2] sm:$0xff] %v278
          %281 = vst [vmem:[#allocation2 + $0x8] sm:$0xff] %v279
        $region52: #{tpu_custom_call.1} parent=35 // pred_fallthru
          _
        %p282 = scmp.lt.s32.totalorder %s22, 0
        %s283 = ssub.s32 0, %s22
        %s284 = scalar_select %p282, %s283, %s22
        %s285 = sand.u32 %s284, 1
        %s286 = ssub.s32 0, %s285
        %s287 = scalar_select %p282, %s286, %s285
        %p288 = scmp.ne.s32.totalorder %s287, 0
        %p289 = scmp.lt.s32.totalorder %s287, 0
        %p290 = pnand %p289, %p288
        %p291 = pneg %p290
        %s292 = sadd.s32 %s287, 2
        %s293 = scalar_select %p291, %s292, %s287
        %s294 = smul.u32 %s293, 16
        %s295 = scalar_lea.vmem [#allocation2], %s294
        %v296 = vld [vmem:[%s295] sm:$0xff]
        %v297 = vld [vmem:[%s295 + $0x8] sm:$0xff]
        %v298 = vld [vmem:[#allocation3] sm:$0xff]
        %v299 = vld [vmem:[#allocation3 + $0x8] sm:$0xff]
        %vm300 = vcmask 130048
        %v302 = vsel %vm300, %v298, 0
        %v305 = vsel %vm300, %v299, 0
        %307 = vmatprep.subr.mxu0 0.0
        %308 = vmatpush1.msra.mxu0 0.0
        %309 = vmatprep.subr.mxu0 0.0
        %310 = vmatpush1.msra.mxu0 0.0
        %311 = vmatprep.subr.mxu0 0.0
        %312 = vmatpush1.msra.mxu0 0.0
        %313 = vmatprep.subr.mxu0 0.0
        %314 = vmatpush1.msra.mxu0 0.0
        %315 = vmatprep.subr.mxu0 0.0
        %316 = vmatpush1.msra.mxu0 0.0
        %317 = vmatprep.subr.mxu0 0.0
        %318 = vmatpush1.msra.mxu0 0.0
        %319 = vmatprep.subr.mxu0 0.0
        %320 = vmatpush1.msra.mxu0 0.0
        %321 = vmatprep.subr.mxu0 0.0
        %322 = vmatpush1.msra.mxu0 0.0
        %323 = vmatprep.subr.mxu0 0.0
        %324 = vmatpush1.msra.mxu0 0.0
        %325 = vmatprep.subr.mxu0 0.0
        %326 = vmatpush1.msra.mxu0 0.0
        %327 = vmatprep.subr.mxu0 0.0
        %328 = vmatpush1.msra.mxu0 0.0
        %329 = vmatprep.subr.mxu0 0.0
        %330 = vmatpush1.msra.mxu0 0.0
        %331 = vmatprep.subr.mxu0 0.0
        %332 = vmatpush1.msra.mxu0 0.0
        %333 = vmatprep.subr.mxu0 0.0
        %334 = vmatpush1.msra.mxu0 0.0
        %335 = vmatprep.subr.mxu0 0.0
        %336 = vmatpush1.msra.mxu0 %v297
        %337 = vmatprep.subr.mxu0 0.0
        %338 = vmatpush1.msra.mxu0 %v296
        %339 = vmatprep.subr.mxu0 0.0
        %340 = vmatpush2.msra.mxu0 0.0
        %341 = vmatprep.subr.mxu0 0.0
        %342 = vmatpush2.msra.mxu0 0.0
        %343 = vmatprep.subr.mxu0 0.0
        %344 = vmatpush2.msra.mxu0 0.0
        %345 = vmatprep.subr.mxu0 0.0
        %346 = vmatpush2.msra.mxu0 0.0
        %347 = vmatprep.subr.mxu0 0.0
        %348 = vmatpush2.msra.mxu0 0.0
        %349 = vmatprep.subr.mxu0 0.0
        %350 = vmatpush2.msra.mxu0 0.0
        %351 = vmatprep.subr.mxu0 0.0
        %352 = vmatpush2.msra.mxu0 0.0
        %353 = vmatprep.subr.mxu0 0.0
        %354 = vmatpush2.msra.mxu0 0.0
        %355 = vmatprep.subr.mxu0 0.0
        %356 = vmatpush2.msra.mxu0 0.0
        %357 = vmatprep.subr.mxu0 0.0
        %358 = vmatpush2.msra.mxu0 0.0
        %359 = vmatprep.subr.mxu0 0.0
        %360 = vmatpush2.msra.mxu0 0.0
        %361 = vmatprep.subr.mxu0 0.0
        %362 = vmatpush2.msra.mxu0 0.0
        %363 = vmatprep.subr.mxu0 0.0
        %364 = vmatpush2.msra.mxu0 0.0
        %365 = vmatprep.subr.mxu0 0.0
        %366 = vmatpush2.msra.mxu0 0.0
        %367 = vmatprep.subr.mxu0 0.0
        %368 = vmatpush2.msra.mxu0 0.0
        %369 = vmatprep.subr.mxu0 0.0
        %370 = vmatpush2.msra.mxu0 0.0
        %371 = vmatprep.mubr.f32.mxu0 0.0
        %372 = vmatmul.mubr.f32.gmra.mxu0 %v302
        %v373 = vpop.f32.mrf.mxu0
        %v374 = vadd.f32 0.0, %v373
        %v375 = vpop.f32.mrf.mxu0
        %376 = vmatprep.mubr.f32.mxu0 0.0
        %377 = vmatmul.mubr.f32.gmra.mxu0 %v305
        %v378 = vpop.f32.mrf.mxu0
        %v379 = vadd.f32 0.0, %v378
        %v380 = vpop.f32.mrf.mxu0
        %381 = vdwg.mxu0
        %v382 = vld [vmem:[%s244] sm:$0xff]
        %v383 = vld [vmem:[%s244 + $0x8] sm:$0xff]
        %v384 = vld [vmem:[%s244 + $0x10] sm:$0xff]
        %v385 = vld [vmem:[%s244 + $0x18] sm:$0xff]
        %v386 = vld [vmem:[%s244 + $0x20] sm:$0xff]
        %v387 = vld [vmem:[%s244 + $0x28] sm:$0xff]
        %v388 = vld [vmem:[%s244 + $0x30] sm:$0xff]
        %v389 = vld [vmem:[%s244 + $0x38] sm:$0xff]
        %v390 = vld [vmem:[%s244 + $0x40] sm:$0xff]
        %v391 = vld [vmem:[%s244 + $0x48] sm:$0xff]
        %v392 = vld [vmem:[%s244 + $0x50] sm:$0xff]
        %v393 = vld [vmem:[%s244 + $0x58] sm:$0xff]
        %v394 = vld [vmem:[%s244 + $0x60] sm:$0xff]
        %v395 = vld [vmem:[%s244 + $0x68] sm:$0xff]
        %v396 = vld [vmem:[%s244 + $0x70] sm:$0xff]
        %v397 = vld [vmem:[%s244 + $0x78] sm:$0xff]
        %v398 = vld [vmem:[%s270] sm:$0x1]
        %v400 = vlaneseq
        %v401 = vshrl.u32 %v400, 7
        %v402 = vsub.s32 0, %v401
        %v403 = vrot.slane %v398, %v402
        %405 = vmatprep.subr.mxu0 0.0
        %406 = vmatpush1.msra.mxu0 %v397
        %407 = vmatprep.subr.mxu0 0.0
        %408 = vmatpush1.msra.mxu0 %v396
        %409 = vmatprep.subr.mxu0 0.0
        %410 = vmatpush1.msra.mxu0 %v395
        %411 = vmatprep.subr.mxu0 0.0
        %412 = vmatpush1.msra.mxu0 %v394
        %413 = vmatprep.subr.mxu0 0.0
        %414 = vmatpush1.msra.mxu0 %v393
        %415 = vmatprep.subr.mxu0 0.0
        %416 = vmatpush1.msra.mxu0 %v392
        %417 = vmatprep.subr.mxu0 0.0
        %418 = vmatpush1.msra.mxu0 %v391
        %419 = vmatprep.subr.mxu0 0.0
        %420 = vmatpush1.msra.mxu0 %v390
        %421 = vmatprep.subr.mxu0 0.0
        %422 = vmatpush1.msra.mxu0 %v389
        %423 = vmatprep.subr.mxu0 0.0
        %424 = vmatpush1.msra.mxu0 %v388
        %425 = vmatprep.subr.mxu0 0.0
        %426 = vmatpush1.msra.mxu0 %v387
        %427 = vmatprep.subr.mxu0 0.0
        %428 = vmatpush1.msra.mxu0 %v386
        %429 = vmatprep.subr.mxu0 0.0
        %430 = vmatpush1.msra.mxu0 %v385
        %431 = vmatprep.subr.mxu0 0.0
        %432 = vmatpush1.msra.mxu0 %v384
        %433 = vmatprep.subr.mxu0 0.0
        %434 = vmatpush1.msra.mxu0 %v383
        %435 = vmatprep.subr.mxu0 0.0
        %436 = vmatpush1.msra.mxu0 %v382
        %437 = vmatprep.subr.mxu0 0.0
        %438 = vmatpush2.msra.mxu0 0.0
        %439 = vmatprep.subr.mxu0 0.0
        %440 = vmatpush2.msra.mxu0 0.0
        %441 = vmatprep.subr.mxu0 0.0
        %442 = vmatpush2.msra.mxu0 0.0
        %443 = vmatprep.subr.mxu0 0.0
        %444 = vmatpush2.msra.mxu0 0.0
        %445 = vmatprep.subr.mxu0 0.0
        %446 = vmatpush2.msra.mxu0 0.0
        %447 = vmatprep.subr.mxu0 0.0
        %448 = vmatpush2.msra.mxu0 0.0
        %449 = vmatprep.subr.mxu0 0.0
        %450 = vmatpush2.msra.mxu0 0.0
        %451 = vmatprep.subr.mxu0 0.0
        %452 = vmatpush2.msra.mxu0 0.0
        %453 = vmatprep.subr.mxu0 0.0
        %454 = vmatpush2.msra.mxu0 0.0
        %455 = vmatprep.subr.mxu0 0.0
        %456 = vmatpush2.msra.mxu0 0.0
        %457 = vmatprep.subr.mxu0 0.0
        %458 = vmatpush2.msra.mxu0 0.0
        %459 = vmatprep.subr.mxu0 0.0
        %460 = vmatpush2.msra.mxu0 0.0
        %461 = vmatprep.subr.mxu0 0.0
        %462 = vmatpush2.msra.mxu0 0.0
        %463 = vmatprep.subr.mxu0 0.0
        %464 = vmatpush2.msra.mxu0 0.0
        %465 = vmatprep.subr.mxu0 0.0
        %466 = vmatpush2.msra.mxu0 0.0
        %467 = vmatprep.subr.mxu0 0.0
        %468 = vmatpush2.msra.mxu0 0.0
        %469 = vmatprep.mubr.f32.mxu0 0.0
        %470 = vmatmul.mubr.f32.gmra.mxu0 %v374
        %v471 = vpop.f32.mrf.mxu0
        %v472 = vadd.f32 %v403, %v471
        %v473 = vpop.f32.mrf.mxu0
        %474 = vmatprep.mubr.f32.mxu0 0.0
        %475 = vmatmul.mubr.f32.gmra.mxu0 %v379
        %v476 = vpop.f32.mrf.mxu0
        %v477 = vadd.f32 %v403, %v476
        %v478 = vpop.f32.mrf.mxu0
        %479 = vdwg.mxu0
        %p480 = scmp.lt.s32.totalorder %s22, 2
        %s481 = scalar_select %p480, 1, 0
        %s482 = scvt.s32.f32 %s481
        %v483 = vmax.f32 %v472, 0.0
        %v484 = vmax.f32 %v477, 0.0
        %v485 = vstv %s482
        %v486 = vmul.f32 %v485, %v483
        %v487 = vmul.f32 %v485, %v484
        %s488 = ssub.f32 1.0, %s482
        %v489 = vstv %s488
        %v490 = vmul.f32 %v489, %v472
        %v491 = vmul.f32 %v489, %v477
        %v492 = vadd.f32 %v486, %v490
        %v493 = vadd.f32 %v487, %v491
        %s494 = sadd.s32 %s22, 1
        %p495 = scmp.lt.s32.totalorder %s494, 0
        %s496 = ssub.s32 0, %s494
        %s497 = scalar_select %p495, %s496, %s494
        %s498 = sand.u32 %s497, 1
        %s499 = ssub.s32 0, %s498
        %s500 = scalar_select %p495, %s499, %s498
        %p501 = scmp.ne.s32.totalorder %s500, 0
        %p502 = scmp.lt.s32.totalorder %s500, 0
        %p503 = pnand %p502, %p501
        %p504 = pneg %p503
        %s505 = sadd.s32 %s500, 2
        %s506 = scalar_select %p504, %s505, %s500
        %s507 = smul.u32 %s506, 16
        %s508 = smul.u32 %s23, 16
        %s509 = sadd.s32 %s507, %s508
        %s510 = scalar_lea.vmem [#allocation2], %s509
        %511 = vst [vmem:[%s510] sm:$0xff] %v492
        %512 = vst [vmem:[%s510 + $0x8] sm:$0xff] %v493
        %513 = vst [vmem:[#allocation9] sm:$0xff] %v492
        %514 = vst [vmem:[#allocation9 + $0x8] sm:$0xff] %v493
        // Predicated region
        $region53: #{tpu_custom_call.1} parent=35 // pred_check
          %p515 = pneg %p147
        $region54: #{tpu_custom_call.1} parent=35 // pred_check_branch
          %517 = sbr.rel (%p515) target = $region56
        $region55: #{tpu_custom_call.1} parent=35 // pred_region
          %s518 = smul.u32 2, %s23
          %s520 = ssub.s32 256, 256
          %521 = vsyncadd [#allocation5], %s520
          %s522 = smul.addr %s518, 128
          %s523 = scalar_lea.hbm %s4, %s522
          %s524 = sshll.u32 [#allocation9], 4
          %s525 = int_to_ptr.vmem [resolvable:$true] %s524
          %530 = dma.vmem_to_hbm [thread:$0]  %s525, 256, %s523, [#allocation5], 128, 128, 8
        $region56: #{tpu_custom_call.1} parent=35 // pred_fallthru
          _
        // Predicated region
        $region57: #{tpu_custom_call.1} parent=35 // pred_check
          %p531 = pneg %p147
        $region58: #{tpu_custom_call.1} parent=35 // pred_check_branch
          %533 = sbr.rel (%p531) target = $region60
        $region59: #{tpu_custom_call.1} parent=35 // pred_region
          %534 = dma.done [#allocation5], 256
        $region60: #{tpu_custom_call.1} parent=35 // pred_fallthru
          _
      $region36: #{tpu_custom_call.1} parent=5 // pred_fallthru
        _
      %p535 = scmp.le.s32.totalorder 2, %s13
      // Predicated region
      $region61: #{tpu_custom_call.1} parent=5 // pred_check
        %p536 = pneg %p535
      $region62: #{tpu_custom_call.1} parent=5 // pred_check_branch
        %538 = sbr.rel (%p536) target = $region64
      $region63: #{tpu_custom_call.1} parent=5 // pred_region
        %s539 = ssub.s32 %s13, 2
      $region64: #{tpu_custom_call.1} parent=5 // pred_fallthru
        _
    $region6: #{tpu_custom_call.1} parent=1 // loop_footer
      %s17 = sadd.s32 1, %s13
    $region7: #{tpu_custom_call.1} parent=1 // loop_footer_branch
      %12 = sbr.rel target = $region3
    $region8: #{tpu_custom_call.1} parent=1 // loop_exit
      _
    %540 = vsyncpa [#allocation4], 1
    %s541 = scalar_lea.sflag [#allocation4], 1
    %542 = vsyncpa %s541, 1
    %543 = vsyncpa [#allocation7], 1
    %544 = vsyncpa [#allocation5], 1
    %s545 = scalar_lea.sflag [#allocation5], 1
    %546 = vsyncpa %s545, 1

</llo_original>
